<compile_context>
chip_gen: v5e
topology: v5e:2x2
jax: 0.10.0
libtpu: 0.0.40
codegen_flags: <defaults>
</compile_context>

<pallas_src>
import functools

import jax
import jax.numpy as jnp
from jax.experimental import pallas as pl
from jax.experimental.pallas import tpu as pltpu


_NCORES = 2                       # "parallel" grid axis; lets v7x's 2 TensorCores split the work
_TILE_BYTES = 2 * 1024 * 1024     # per-step streaming tile budget (safe w/ double buffering on v5e)
_MAX_BATCH = 32                   # cap on images per step (inner per-image loop is unrolled)
_ACC_TILE = (8, 128)              # one f32 vreg per accumulator (lane-dense, no masked stores)


# ----------------------------------------------------------------------------
# align_corners=True bilinear interpolation matrix (out_size x in_size)
# ----------------------------------------------------------------------------
def _bilinear_matrix(out_size: int, in_size: int, dtype=jnp.float32):
    if out_size == 1:
        coords = jnp.zeros((1,), dtype=jnp.float32)
    else:
        coords = jnp.arange(out_size, dtype=jnp.float32) * (in_size - 1) / (out_size - 1)
    lo = jnp.floor(coords).astype(jnp.int32)
    hi = jnp.minimum(lo + 1, in_size - 1)
    frac = coords - lo.astype(jnp.float32)
    m = (jax.nn.one_hot(lo, in_size, dtype=jnp.float32) * (1.0 - frac)[:, None]
         + jax.nn.one_hot(hi, in_size, dtype=jnp.float32) * frac[:, None])
    return m.astype(dtype)


# ----------------------------------------------------------------------------
# fused kernel: bilinear downsample (separable MXU matmuls) + all MSE partial sums
# ----------------------------------------------------------------------------
def _fused_kernel(gt_ref, pred_ref, wh_ref, wwt_ref,
                  sgt_ref, sres_ref, spp_ref, spg_ref, sgg_ref, *, batch):
    @pl.when(pl.program_id(1) == 0)
    def _():
        sgt_ref[...] = jnp.zeros_like(sgt_ref)
        sres_ref[...] = jnp.zeros_like(sres_ref)
        spp_ref[...] = jnp.zeros_like(spp_ref)
        spg_ref[...] = jnp.zeros_like(spg_ref)
        sgg_ref[...] = jnp.zeros_like(sgg_ref)

    wh = wh_ref[...]     # (Ho, Hi)
    wwt = wwt_ref[...]   # (Wi, Wo), already transposed in the wrapper

    sgt = jnp.float32(0.0)
    sres = jnp.float32(0.0)
    spp = jnp.float32(0.0)
    spg = jnp.float32(0.0)
    sgg = jnp.float32(0.0)
    # `batch` is a small compile-time constant -> unrolled loop over the images of this block.
    for b in range(batch):
        x = gt_ref[b].astype(jnp.float32)        # (Hi, Wi)
        p = pred_ref[b].astype(jnp.float32)      # (Ho, Wo)
        r = jnp.dot(jnp.dot(wh, x, preferred_element_type=jnp.float32),
                    wwt, preferred_element_type=jnp.float32)            # (Ho, Wo) downsampled gt
        sgt = sgt + jnp.sum(x)
        sres = sres + jnp.sum(r)
        spp = spp + jnp.sum(p * p)
        spg = spg + jnp.sum(p * r)
        sgg = sgg + jnp.sum(r * r)

    # broadcast scalar across the (1, 8, 128) accumulator tile; wrapper reads element [0, 0]
    sgt_ref[...] += sgt
    sres_ref[...] += sres
    spp_ref[...] += spp
    spg_ref[...] += spg
    sgg_ref[...] += sgg


def _fused_downsample_mse_sums(gt_nc, pred_nc, wh, wwt):
    NC, Hi, Wi = gt_nc.shape
    NCp, Ho, Wo = pred_nc.shape
    assert NCp == NC

    bytes_per_img = Hi * Wi * gt_nc.dtype.itemsize + Ho * Wo * pred_nc.dtype.itemsize
    batch = max(1, min(_MAX_BATCH,
                       _TILE_BYTES // max(1, bytes_per_img),
                       -(-NC // _NCORES)))
    chunk = _NCORES * batch
    nc_pad = -(-NC // chunk) * chunk
    if nc_pad != NC:
        # zero padding contributes 0 to every partial sum, so it is semantics-preserving
        pad = ((0, nc_pad - NC), (0, 0), (0, 0))
        gt_nc = jnp.pad(gt_nc, pad)
        pred_nc = jnp.pad(pred_nc, pad)
    nsteps = nc_pad // chunk

    acc_shape = jax.ShapeDtypeStruct((_NCORES,) + _ACC_TILE, jnp.float32)
    acc_spec = pl.BlockSpec((1,) + _ACC_TILE, lambda c, i: (c, 0, 0))

    sums = pl.pallas_call(
        functools.partial(_fused_kernel, batch=batch),
        out_shape=(acc_shape,) * 5,
        grid_spec=pltpu.PrefetchScalarGridSpec(
            num_scalar_prefetch=0,
            grid=(_NCORES, nsteps),
            in_specs=[
                pl.BlockSpec((batch, Hi, Wi), lambda c, i: (c * nsteps + i, 0, 0)),
                pl.BlockSpec((batch, Ho, Wo), lambda c, i: (c * nsteps + i, 0, 0)),
                pl.BlockSpec((Ho, Hi), lambda c, i: (0, 0)),
                pl.BlockSpec((Wi, Wo), lambda c, i: (0, 0)),
            ],
            out_specs=(acc_spec,) * 5,
        ),
        compiler_params=pltpu.CompilerParams(
            dimension_semantics=("parallel", "arbitrary")),
    )(gt_nc, pred_nc, wh, wwt)

    # combine the per-core partial sums (tiny) with plain jnp
    sgt, sres, spp, spg, sgg = (jnp.sum(s[:, 0, 0]) for s in sums)
    return sgt, sres, spp, spg, sgg


# ----------------------------------------------------------------------------
# outstride == 1 path: tiled, pipelined sum of squared differences
# ----------------------------------------------------------------------------
def _ssd_kernel(pred_ref, gt_ref, acc_ref):
    @pl.when(pl.program_id(0) == 0)
    def _():
        acc_ref[...] = jnp.zeros_like(acc_ref)
    d = pred_ref[...].astype(jnp.float32) - gt_ref[...].astype(jnp.float32)
    acc_ref[...] += jnp.sum(d * d)


def _sum_sq_diff(pred_nc, gt_nc):
    NC, H, W = pred_nc.shape
    bytes_per_img = H * W * (pred_nc.dtype.itemsize + gt_nc.dtype.itemsize)
    batch = max(1, min(NC, _TILE_BYTES // max(1, bytes_per_img)))
    nc_pad = -(-NC // batch) * batch
    if nc_pad != NC:
        pad = ((0, nc_pad - NC), (0, 0), (0, 0))
        pred_nc = jnp.pad(pred_nc, pad)
        gt_nc = jnp.pad(gt_nc, pad)
    nsteps = nc_pad // batch

    acc = pl.pallas_call(
        _ssd_kernel,
        out_shape=jax.ShapeDtypeStruct(_ACC_TILE, jnp.float32),
        grid_spec=pltpu.PrefetchScalarGridSpec(
            num_scalar_prefetch=0,
            grid=(nsteps,),
            in_specs=[
                pl.BlockSpec((batch, H, W), lambda i: (i, 0, 0)),
                pl.BlockSpec((batch, H, W), lambda i: (i, 0, 0)),
            ],
            out_specs=pl.BlockSpec(_ACC_TILE, lambda i: (0, 0)),
        ),
        compiler_params=pltpu.CompilerParams(dimension_semantics=("arbitrary",)),
    )(pred_nc, gt_nc)
    return acc[0, 0]


# ----------------------------------------------------------------------------
# module wrapper
# ----------------------------------------------------------------------------
class MSELossPallas:
    def __init__(self, outstride, weight, reduction="mean"):
        assert reduction == "mean"
        self.outstride = outstride
        self.weight = weight  # stored but unused in forward (matches the PyTorch module)

    def __call__(self, inputs):
        pred = inputs["density_pred"]   # (N, C, Ho, Wo)
        gt = inputs["density"]          # (N, C, Hi, Wi)

        N, C, Ho, Wo = pred.shape
        pred_nc = pred.reshape(N * C, Ho, Wo)
        inv_n = 1.0 / float(N * C * Ho * Wo)

        if self.outstride != 1:
            _, _, Hi, Wi = gt.shape
            gt_nc = gt.reshape(N * C, Hi, Wi)
            # TODO(synk): matches PyTorch only when Hi, Wi are divisible by outstride
            # (i.e. resized gt has exactly pred's spatial shape), the module's valid use case.
            wh = _bilinear_matrix(Ho, Hi)                 # (Ho, Hi)
            wwt = _bilinear_matrix(Wo, Wi).T              # (Wi, Wo), pre-transposed for the kernel
            sgt, sres, spp, spg, sgg = _fused_downsample_mse_sums(gt_nc, pred_nc, wh, wwt)
            scale = sgt / sres                            # gt_down / cnt_cur * cnt_gt, folded into the algebra
            # mean((pred - scale * gt_down)^2), expanded so gt_down never hits HBM
            return (spp - 2.0 * scale * spg + scale * scale * sgg) * inv_n
        else:
            gt_nc = gt.reshape(N * C, Ho, Wo)
            return _sum_sq_diff(pred_nc, gt_nc) * inv_n


if __name__ == "__main__":
    key = jax.random.PRNGKey(0)
    k1, k2 = jax.random.split(key)

    N, C = 2, 1
    Hi = Wi = 16
    outstride = 4
    Ho, Wo = Hi // outstride, Wi // outstride

    density = jax.nn.relu(jax.random.normal(k1, (N, C, Hi, Wi), jnp.float32))
    density_pred = jax.nn.relu(jax.random.normal(k2, (N, C, Ho, Wo), jnp.float32))

    loss_fn = MSELossPallas(outstride=outstride, weight=1.0, reduction="mean")
    loss = loss_fn({"density_pred": density_pred, "density": density})
    loss = jax.block_until_ready(loss)

    # pure-JAX reference using the same separable bilinear formulation
    wh = _bilinear_matrix(Ho, Hi)
    ww = _bilinear_matrix(Wo, Wi)
    gt_nc = density.reshape(N * C, Hi, Wi)
    resized_ref = jnp.einsum("oh,nhw,pw->nop", wh, gt_nc, ww)
    cnt_gt = jnp.sum(gt_nc)
    cnt_cur = jnp.sum(resized_ref)
    gt_scaled = resized_ref / cnt_cur * cnt_gt
    loss_ref = jnp.mean((density_pred.reshape(N * C, Ho, Wo) - gt_scaled) ** 2)

    assert jnp.allclose(loss, loss_ref, rtol=1e-4, atol=1e-5), (loss, loss_ref)
    print("KERNEL_OK")
</pallas_src>

<mosaic_0001>
module attributes {stable_mosaic.version = 11 : i64} {
  func.func @_fused_kernel(%arg0: i32, %arg1: i32, %arg2: memref<1x16x16xf32, #tpu.memory_space<vmem>>, %arg3: memref<1x4x4xf32, #tpu.memory_space<vmem>>, %arg4: memref<4x16xf32, #tpu.memory_space<vmem>>, %arg5: memref<16x4xf32, #tpu.memory_space<vmem>>, %arg6: memref<1x8x128xf32, #tpu.memory_space<vmem>>, %arg7: memref<1x8x128xf32, #tpu.memory_space<vmem>>, %arg8: memref<1x8x128xf32, #tpu.memory_space<vmem>>, %arg9: memref<1x8x128xf32, #tpu.memory_space<vmem>>, %arg10: memref<1x8x128xf32, #tpu.memory_space<vmem>>) attributes {dimension_semantics = [#tpu.dimension_semantics<parallel>, #tpu.dimension_semantics<arbitrary>], iteration_bounds = array<i64: 2, 1>, scalar_prefetch = 0 : i64, scratch_operands = 0 : i64, tpu.core_type = #tpu.core_type<tc>, window_params = [{transform_indices = @transform_0, window_bounds = array<i64: 1, 16, 16>}, {transform_indices = @transform_1, window_bounds = array<i64: 1, 4, 4>}, {pipeline_mode = #tpu.pipeline_mode<synchronous>, transform_indices = @transform_2, window_bounds = array<i64: 4, 16>}, {pipeline_mode = #tpu.pipeline_mode<synchronous>, transform_indices = @transform_3, window_bounds = array<i64: 16, 4>}, {transform_indices = @transform_4, window_bounds = array<i64: 1, 8, 128>}, {transform_indices = @transform_5, window_bounds = array<i64: 1, 8, 128>}, {transform_indices = @transform_6, window_bounds = array<i64: 1, 8, 128>}, {transform_indices = @transform_7, window_bounds = array<i64: 1, 8, 128>}, {transform_indices = @transform_8, window_bounds = array<i64: 1, 8, 128>}]} {
    %c0_i32 = arith.constant 0 : i32
    %0 = arith.cmpi eq, %arg1, %c0_i32 : i32
    %1 = arith.extui %0 : i1 to i32
    %c0_i32_0 = arith.constant 0 : i32
    %2 = arith.cmpi ne, %1, %c0_i32_0 : i32
    scf.if %2 {
      %cst_51 = arith.constant 0.000000e+00 : f32
      %59 = vector.broadcast %cst_51 : f32 to vector<1x8x128xf32>
      %c0_52 = arith.constant 0 : index
      %c0_53 = arith.constant 0 : index
      %c0_54 = arith.constant 0 : index
      %60 = vector.load %arg6[%c0_52, %c0_53, %c0_54] : memref<1x8x128xf32, #tpu.memory_space<vmem>>, vector<1x8x128xf32>
      tpu.vector_store %arg6[%c0_52, %c0_53, %c0_54], %59 {strides = array<i32>} : memref<1x8x128xf32, #tpu.memory_space<vmem>>, vector<1x8x128xf32>,
      %cst_55 = arith.constant 0.000000e+00 : f32
      %61 = vector.broadcast %cst_55 : f32 to vector<1x8x128xf32>
      %c0_56 = arith.constant 0 : index
      %c0_57 = arith.constant 0 : index
      %c0_58 = arith.constant 0 : index
      %62 = vector.load %arg7[%c0_56, %c0_57, %c0_58] : memref<1x8x128xf32, #tpu.memory_space<vmem>>, vector<1x8x128xf32>
      tpu.vector_store %arg7[%c0_56, %c0_57, %c0_58], %61 {strides = array<i32>} : memref<1x8x128xf32, #tpu.memory_space<vmem>>, vector<1x8x128xf32>,
      %cst_59 = arith.constant 0.000000e+00 : f32
      %63 = vector.broadcast %cst_59 : f32 to vector<1x8x128xf32>
      %c0_60 = arith.constant 0 : index
      %c0_61 = arith.constant 0 : index
      %c0_62 = arith.constant 0 : index
      %64 = vector.load %arg8[%c0_60, %c0_61, %c0_62] : memref<1x8x128xf32, #tpu.memory_space<vmem>>, vector<1x8x128xf32>
      tpu.vector_store %arg8[%c0_60, %c0_61, %c0_62], %63 {strides = array<i32>} : memref<1x8x128xf32, #tpu.memory_space<vmem>>, vector<1x8x128xf32>,
      %cst_63 = arith.constant 0.000000e+00 : f32
      %65 = vector.broadcast %cst_63 : f32 to vector<1x8x128xf32>
      %c0_64 = arith.constant 0 : index
      %c0_65 = arith.constant 0 : index
      %c0_66 = arith.constant 0 : index
      %66 = vector.load %arg9[%c0_64, %c0_65, %c0_66] : memref<1x8x128xf32, #tpu.memory_space<vmem>>, vector<1x8x128xf32>
      tpu.vector_store %arg9[%c0_64, %c0_65, %c0_66], %65 {strides = array<i32>} : memref<1x8x128xf32, #tpu.memory_space<vmem>>, vector<1x8x128xf32>,
      %cst_67 = arith.constant 0.000000e+00 : f32
      %67 = vector.broadcast %cst_67 : f32 to vector<1x8x128xf32>
      %c0_68 = arith.constant 0 : index
      %c0_69 = arith.constant 0 : index
      %c0_70 = arith.constant 0 : index
      %68 = vector.load %arg10[%c0_68, %c0_69, %c0_70] : memref<1x8x128xf32, #tpu.memory_space<vmem>>, vector<1x8x128xf32>
      tpu.vector_store %arg10[%c0_68, %c0_69, %c0_70], %67 {strides = array<i32>} : memref<1x8x128xf32, #tpu.memory_space<vmem>>, vector<1x8x128xf32>,
    } else {
    }
    %c0 = arith.constant 0 : index
    %c0_1 = arith.constant 0 : index
    %3 = vector.load %arg4[%c0, %c0_1] : memref<4x16xf32, #tpu.memory_space<vmem>>, vector<4x16xf32>
    %c0_2 = arith.constant 0 : index
    %c0_3 = arith.constant 0 : index
    %4 = vector.load %arg5[%c0_2, %c0_3] : memref<16x4xf32, #tpu.memory_space<vmem>>, vector<16x4xf32>
    %c0_4 = arith.constant 0 : index
    %c0_5 = arith.constant 0 : index
    %c0_6 = arith.constant 0 : index
    %5 = vector.load %arg2[%c0_4, %c0_5, %c0_6] : memref<1x16x16xf32, #tpu.memory_space<vmem>>, vector<1x16x16xf32>
    %6 = vector.shape_cast %5 : vector<1x16x16xf32> to vector<16x16xf32>
    %c0_7 = arith.constant 0 : index
    %c0_8 = arith.constant 0 : index
    %c0_9 = arith.constant 0 : index
    %7 = vector.load %arg3[%c0_7, %c0_8, %c0_9] : memref<1x4x4xf32, #tpu.memory_space<vmem>>, vector<1x4x4xf32>
    %8 = vector.shape_cast %7 : vector<1x4x4xf32> to vector<4x4xf32>
    %cst = arith.constant dense<0.000000e+00> : vector<4x16xf32>
    %9 = tpu.matmul %3, %6, %cst {dimension_numbers = #tpu.dot_dimension_numbers<[1], [0], [0], [1], [0, 0, 1, 1], [], []>} : vector<4x16xf32>, vector<16x16xf32>, vector<4x16xf32> -> vector<4x16xf32>
    %cst_10 = arith.constant dense<0.000000e+00> : vector<4x4xf32>
    %10 = tpu.matmul %9, %4, %cst_10 {dimension_numbers = #tpu.dot_dimension_numbers<[1], [0], [0], [1], [0, 0, 1, 1], [], []>} : vector<4x16xf32>, vector<16x4xf32>, vector<4x4xf32> -> vector<4x4xf32>
    %11 = vector.shape_cast %6 : vector<16x16xf32> to vector<1x16x16xf32>
    %cst_11 = arith.constant dense<0.000000e+00> : vector<1xf32>
    %12 = vector.multi_reduction <add>, %11, %cst_11 [1, 2] : vector<1x16x16xf32> to vector<1xf32>
    %13 = vector.shape_cast %12 : vector<1xf32> to vector<1x1x1xf32>
    %14 = vector.extract %13[0, 0, 0] : f32 from vector<1x1x1xf32>
    %cst_12 = arith.constant 0.000000e+00 : f32
    %15 = arith.addf %cst_12, %14 : f32
    %16 = vector.shape_cast %10 : vector<4x4xf32> to vector<1x4x4xf32>
    %cst_13 = arith.constant dense<0.000000e+00> : vector<1xf32>
    %17 = vector.multi_reduction <add>, %16, %cst_13 [1, 2] : vector<1x4x4xf32> to vector<1xf32>
    %18 = vector.shape_cast %17 : vector<1xf32> to vector<1x1x1xf32>
    %19 = vector.extract %18[0, 0, 0] : f32 from vector<1x1x1xf32>
    %cst_14 = arith.constant 0.000000e+00 : f32
    %20 = arith.addf %cst_14, %19 : f32
    %21 = arith.mulf %8, %8 : vector<4x4xf32>
    %22 = vector.shape_cast %21 : vector<4x4xf32> to vector<1x4x4xf32>
    %cst_15 = arith.constant dense<0.000000e+00> : vector<1xf32>
    %23 = vector.multi_reduction <add>, %22, %cst_15 [1, 2] : vector<1x4x4xf32> to vector<1xf32>
    %24 = vector.shape_cast %23 : vector<1xf32> to vector<1x1x1xf32>
    %25 = vector.extract %24[0, 0, 0] : f32 from vector<1x1x1xf32>
    %cst_16 = arith.constant 0.000000e+00 : f32
    %26 = arith.addf %cst_16, %25 : f32
    %27 = arith.mulf %8, %10 : vector<4x4xf32>
    %28 = vector.shape_cast %27 : vector<4x4xf32> to vector<1x4x4xf32>
    %cst_17 = arith.constant dense<0.000000e+00> : vector<1xf32>
    %29 = vector.multi_reduction <add>, %28, %cst_17 [1, 2] : vector<1x4x4xf32> to vector<1xf32>
    %30 = vector.shape_cast %29 : vector<1xf32> to vector<1x1x1xf32>
    %31 = vector.extract %30[0, 0, 0] : f32 from vector<1x1x1xf32>
    %cst_18 = arith.constant 0.000000e+00 : f32
    %32 = arith.addf %cst_18, %31 : f32
    %33 = arith.mulf %10, %10 : vector<4x4xf32>
    %34 = vector.shape_cast %33 : vector<4x4xf32> to vector<1x4x4xf32>
    %cst_19 = arith.constant dense<0.000000e+00> : vector<1xf32>
    %35 = vector.multi_reduction <add>, %34, %cst_19 [1, 2] : vector<1x4x4xf32> to vector<1xf32>
    %36 = vector.shape_cast %35 : vector<1xf32> to vector<1x1x1xf32>
    %37 = vector.extract %36[0, 0, 0] : f32 from vector<1x1x1xf32>
    %cst_20 = arith.constant 0.000000e+00 : f32
    %38 = arith.addf %cst_20, %37 : f32
    %c0_21 = arith.constant 0 : index
    %c0_22 = arith.constant 0 : index
    %c0_23 = arith.constant 0 : index
    %39 = vector.load %arg6[%c0_21, %c0_22, %c0_23] : memref<1x8x128xf32, #tpu.memory_space<vmem>>, vector<1x8x128xf32>
    %40 = vector.broadcast %15 : f32 to vector<1x8x128xf32>
    %41 = arith.addf %39, %40 : vector<1x8x128xf32>
    %c0_24 = arith.constant 0 : index
    %c0_25 = arith.constant 0 : index
    %c0_26 = arith.constant 0 : index
    %42 = vector.load %arg6[%c0_24, %c0_25, %c0_26] : memref<1x8x128xf32, #tpu.memory_space<vmem>>, vector<1x8x128xf32>
    tpu.vector_store %arg6[%c0_24, %c0_25, %c0_26], %41 {strides = array<i32>} : memref<1x8x128xf32, #tpu.memory_space<vmem>>, vector<1x8x128xf32>,
    %c0_27 = arith.constant 0 : index
    %c0_28 = arith.constant 0 : index
    %c0_29 = arith.constant 0 : index
    %43 = vector.load %arg7[%c0_27, %c0_28, %c0_29] : memref<1x8x128xf32, #tpu.memory_space<vmem>>, vector<1x8x128xf32>
    %44 = vector.broadcast %20 : f32 to vector<1x8x128xf32>
    %45 = arith.addf %43, %44 : vector<1x8x128xf32>
    %c0_30 = arith.constant 0 : index
    %c0_31 = arith.constant 0 : index
    %c0_32 = arith.constant 0 : index
    %46 = vector.load %arg7[%c0_30, %c0_31, %c0_32] : memref<1x8x128xf32, #tpu.memory_space<vmem>>, vector<1x8x128xf32>
    tpu.vector_store %arg7[%c0_30, %c0_31, %c0_32], %45 {strides = array<i32>} : memref<1x8x128xf32, #tpu.memory_space<vmem>>, vector<1x8x128xf32>,
    %c0_33 = arith.constant 0 : index
    %c0_34 = arith.constant 0 : index
    %c0_35 = arith.constant 0 : index
    %47 = vector.load %arg8[%c0_33, %c0_34, %c0_35] : memref<1x8x128xf32, #tpu.memory_space<vmem>>, vector<1x8x128xf32>
    %48 = vector.broadcast %26 : f32 to vector<1x8x128xf32>
    %49 = arith.addf %47, %48 : vector<1x8x128xf32>
    %c0_36 = arith.constant 0 : index
    %c0_37 = arith.constant 0 : index
    %c0_38 = arith.constant 0 : index
    %50 = vector.load %arg8[%c0_36, %c0_37, %c0_38] : memref<1x8x128xf32, #tpu.memory_space<vmem>>, vector<1x8x128xf32>
    tpu.vector_store %arg8[%c0_36, %c0_37, %c0_38], %49 {strides = array<i32>} : memref<1x8x128xf32, #tpu.memory_space<vmem>>, vector<1x8x128xf32>,
    %c0_39 = arith.constant 0 : index
    %c0_40 = arith.constant 0 : index
    %c0_41 = arith.constant 0 : index
    %51 = vector.load %arg9[%c0_39, %c0_40, %c0_41] : memref<1x8x128xf32, #tpu.memory_space<vmem>>, vector<1x8x128xf32>
    %52 = vector.broadcast %32 : f32 to vector<1x8x128xf32>
    %53 = arith.addf %51, %52 : vector<1x8x128xf32>
    %c0_42 = arith.constant 0 : index
    %c0_43 = arith.constant 0 : index
    %c0_44 = arith.constant 0 : index
    %54 = vector.load %arg9[%c0_42, %c0_43, %c0_44] : memref<1x8x128xf32, #tpu.memory_space<vmem>>, vector<1x8x128xf32>
    tpu.vector_store %arg9[%c0_42, %c0_43, %c0_44], %53 {strides = array<i32>} : memref<1x8x128xf32, #tpu.memory_space<vmem>>, vector<1x8x128xf32>,
    %c0_45 = arith.constant 0 : index
    %c0_46 = arith.constant 0 : index
    %c0_47 = arith.constant 0 : index
    %55 = vector.load %arg10[%c0_45, %c0_46, %c0_47] : memref<1x8x128xf32, #tpu.memory_space<vmem>>, vector<1x8x128xf32>
    %56 = vector.broadcast %38 : f32 to vector<1x8x128xf32>
    %57 = arith.addf %55, %56 : vector<1x8x128xf32>
    %c0_48 = arith.constant 0 : index
    %c0_49 = arith.constant 0 : index
    %c0_50 = arith.constant 0 : index
    %58 = vector.load %arg10[%c0_48, %c0_49, %c0_50] : memref<1x8x128xf32, #tpu.memory_space<vmem>>, vector<1x8x128xf32>
    tpu.vector_store %arg10[%c0_48, %c0_49, %c0_50], %57 {strides = array<i32>} : memref<1x8x128xf32, #tpu.memory_space<vmem>>, vector<1x8x128xf32>,
    return
  }
  func.func @transform_0(%arg0: i32, %arg1: i32) -> (i32, i32, i32) {
    %c1_i32 = arith.constant 1 : i32
    %0 = arith.muli %arg0, %c1_i32 : i32
    %1 = arith.addi %0, %arg1 : i32
    %c0_i32 = arith.constant 0 : i32
    %c0_i32_0 = arith.constant 0 : i32
    %c0_i32_1 = arith.constant 0 : i32
    return %1, %c0_i32, %c0_i32_0 : i32, i32, i32
  }
  func.func @transform_1(%arg0: i32, %arg1: i32) -> (i32, i32, i32) {
    %c1_i32 = arith.constant 1 : i32
    %0 = arith.muli %arg0, %c1_i32 : i32
    %1 = arith.addi %0, %arg1 : i32
    %c0_i32 = arith.constant 0 : i32
    %c0_i32_0 = arith.constant 0 : i32
    %c0_i32_1 = arith.constant 0 : i32
    return %1, %c0_i32, %c0_i32_0 : i32, i32, i32
  }
  func.func @transform_2(%arg0: i32, %arg1: i32) -> (i32, i32) {
    %c0_i32 = arith.constant 0 : i32
    %c0_i32_0 = arith.constant 0 : i32
    %c0_i32_1 = arith.constant 0 : i32
    return %c0_i32, %c0_i32_0 : i32, i32
  }
  func.func @transform_3(%arg0: i32, %arg1: i32) -> (i32, i32) {
    %c0_i32 = arith.constant 0 : i32
    %c0_i32_0 = arith.constant 0 : i32
    %c0_i32_1 = arith.constant 0 : i32
    return %c0_i32, %c0_i32_0 : i32, i32
  }
  func.func @transform_4(%arg0: i32, %arg1: i32) -> (i32, i32, i32) {
    %c0_i32 = arith.constant 0 : i32
    %c0_i32_0 = arith.constant 0 : i32
    %c0_i32_1 = arith.constant 0 : i32
    return %arg0, %c0_i32, %c0_i32_0 : i32, i32, i32
  }
  func.func @transform_5(%arg0: i32, %arg1: i32) -> (i32, i32, i32) {
    %c0_i32 = arith.constant 0 : i32
    %c0_i32_0 = arith.constant 0 : i32
    %c0_i32_1 = arith.constant 0 : i32
    return %arg0, %c0_i32, %c0_i32_0 : i32, i32, i32
  }
  func.func @transform_6(%arg0: i32, %arg1: i32) -> (i32, i32, i32) {
    %c0_i32 = arith.constant 0 : i32
    %c0_i32_0 = arith.constant 0 : i32
    %c0_i32_1 = arith.constant 0 : i32
    return %arg0, %c0_i32, %c0_i32_0 : i32, i32, i32
  }
  func.func @transform_7(%arg0: i32, %arg1: i32) -> (i32, i32, i32) {
    %c0_i32 = arith.constant 0 : i32
    %c0_i32_0 = arith.constant 0 : i32
    %c0_i32_1 = arith.constant 0 : i32
    return %arg0, %c0_i32, %c0_i32_0 : i32, i32, i32
  }
  func.func @transform_8(%arg0: i32, %arg1: i32) -> (i32, i32, i32) {
    %c0_i32 = arith.constant 0 : i32
    %c0_i32_0 = arith.constant 0 : i32
    %c0_i32_1 = arith.constant 0 : i32
    return %arg0, %c0_i32, %c0_i32_0 : i32, i32, i32
  }
}

</mosaic_0001>

<llo_original>
// kernel: tpu_custom_call.1
$region0: #{tpu_custom_call.1}
  #allocation0 [shape = 'u32[]', space=smem, size = 0x4, offset = 0x4, fixed_abs, tag = 'smem constant byte address 0x4 - core index']
  #allocation1 [shape = 'u32[72,128]{1,0:T(1,128)}', space=vmem, size = 0x9000, scoped, tag = 'internal scratch']
  %s0 = inlined_call_operand.hbm [shape: f32[2,16,16], index: 0, kind: input, shape index: {}]
  %s1 = inlined_call_operand.vmem [shape: f32[2,4,4], index: 1, kind: input, shape index: {}]
  %s2 = inlined_call_operand.vmem [shape: f32[4,16], index: 2, kind: input, shape index: {}]
  %s3 = inlined_call_operand.vmem [shape: f32[16,4], index: 3, kind: input, shape index: {}]
  %s4 = inlined_call_operand.hbm [shape: f32[2,8,128], index: 4, kind: output, shape index: {0}]
  %s5 = inlined_call_operand.hbm [shape: f32[2,8,128], index: 5, kind: output, shape index: {1}]
  %s6 = inlined_call_operand.hbm [shape: f32[2,8,128], index: 6, kind: output, shape index: {2}]
  %s7 = inlined_call_operand.hbm [shape: f32[2,8,128], index: 7, kind: output, shape index: {3}]
  %s8 = inlined_call_operand.hbm [shape: f32[2,8,128], index: 8, kind: output, shape index: {4}]
  %9 = xla_tuple %s4, %s5, %s6, %s7, %s8
  %s10 = sld [smem:[#allocation0]]
  $region89: #{tpu_custom_call.1} parent=0
    _
  %s12 = ssub.s32 1, %s10
  %s13 = scalar_select 0, %s12, %s10
  $region1: #{tpu_custom_call.1} parent=0
    #allocation2 [shape = 'u8[16384]{0}', space=vmem, size = 0x4000, scoped, tag = 'input window, operand 0']
    #allocation3 [shape = 's32[2]{0}', space=sflag, size = 0x8, scoped, tag = 'scoped memory for tpu_custom_call.1']
    #allocation4 [shape = 's32[2]{0}', space=sflag, size = 0x8, scoped, tag = 'scoped memory for tpu_custom_call.1']
    #allocation5 [shape = 'u8[8192]{0}', space=vmem, size = 0x2000, scoped, tag = 'output window, operand 0']
    #allocation6 [shape = 'u8[8192]{0}', space=vmem, size = 0x2000, scoped, tag = 'output window, operand 1']
    #allocation7 [shape = 's32[2]{0}', space=sflag, size = 0x8, scoped, tag = 'scoped memory for tpu_custom_call.1']
    #allocation8 [shape = 'u8[8192]{0}', space=vmem, size = 0x2000, scoped, tag = 'output window, operand 2']
    #allocation9 [shape = 'u8[8192]{0}', space=vmem, size = 0x2000, scoped, tag = 'output window, operand 3']
    #allocation10 [shape = 's32[2]{0}', space=sflag, size = 0x8, scoped, tag = 'scoped memory for tpu_custom_call.1']
    #allocation11 [shape = 'u8[8192]{0}', space=vmem, size = 0x2000, scoped, tag = 'output window, operand 4']
    %14 = vsyncpa [#allocation3], 0
    %s15 = scalar_lea.sflag [#allocation3], 1
    %16 = vsyncpa %s15, 0
    %17 = vsyncpa [#allocation4], 0
    %s18 = scalar_lea.sflag [#allocation4], 1
    %19 = vsyncpa %s18, 0
    %20 = vsyncpa [#allocation7], 0
    %s21 = scalar_lea.sflag [#allocation7], 1
    %22 = vsyncpa %s21, 0
    %23 = vsyncpa [#allocation10], 0
    %s24 = scalar_lea.sflag [#allocation10], 1
    %25 = vsyncpa %s24, 0
    loop: start=0, step=1, limit=4
    $region2: #{tpu_custom_call.1} parent=1 // loop_pre_header
      _
    $region3: #{tpu_custom_call.1} parent=1 // loop_header
      %s27 = sphi 0, %s31
      %p28 = scmp.ge.s32.totalorder %s27, 4
      %s34 = sphi 0, %s46
      %s35 = sphi 0, %s42
      %s36 = sphi 0, %s34
      %s37 = sphi 0, %s35
      %s38 = sphi 0, %s36
      %s39 = sphi 0, %s37
      %s51 = sphi 0, %s53
      %s54 = sphi 0, %s51
      %s55 = sphi 0, %s54
      %s71 = sphi 0, %s55
      %s79 = sphi 0, %s81
      %s82 = sphi 0, %s79
      %s83 = sphi 0, %s82
      %s99 = sphi 0, %s83
      %s103 = sphi 0, %s103
      %s105 = sphi 0, %s103
      %s106 = sphi 0, %s105
      %s120 = sphi 0, %s106
      %s124 = sphi 0, %s124
      %s126 = sphi 0, %s124
      %s127 = sphi 0, %s126
      %s141 = sphi 0, %s127
      %s147 = sphi 0, %s149
      %s150 = sphi 0, %s147
      %s151 = sphi 0, %s150
      %s167 = sphi 0, %s151
      %s173 = sphi 0, %s175
      %s176 = sphi 0, %s173
      %s177 = sphi 0, %s176
      %s193 = sphi 0, %s177
      %s199 = sphi 0, %s201
      %s202 = sphi 0, %s199
      %s203 = sphi 0, %s202
      %s219 = sphi 0, %s203
      %s225 = sphi 0, %s227
      %s228 = sphi 0, %s225
      %s229 = sphi 0, %s228
      %s245 = sphi 0, %s229
      %s251 = sphi 0, %s253
      %s254 = sphi 0, %s251
      %s255 = sphi 0, %s254
      %s271 = sphi 0, %s255
    $region4: #{tpu_custom_call.1} parent=1 // loop_header_branch
      %30 = sbr.rel (%p28) target = $region8
    $region5: #{tpu_custom_call.1} parent=1 // loop_body
      %s32 = ssub.s32 %s27, 1
      %s33 = ssub.s32 %s27, 2
      %s40 = sadd.s32 1, %s35
      %p41 = scmp.ge.s32.totalorder %s40, 1
      %s42 = scalar_select %p41, 0, %s40
      %s43 = sadd.s32 1, %s34
      %s44 = scalar_select %p41, %s43, %s34
      %p45 = scmp.ge.s32.totalorder %s44, 2
      %s46 = scalar_select %p45, 0, %s44
      %s47 = sadd.s32 %s34, %s35
      %s48 = sadd.s32 %s46, %s42
      %s49 = ssub.s32 %s47, %s48
      %p50 = scmp.eq.s32.totalorder %s49, 0
      %s52 = sadd.s32 %s51, 1
      %s53 = scalar_select %p50, %s51, %s52
      %p56 = pneg %p50
      %p57 = scmp.eq.s32.totalorder %s27, 1
      %p58 = por %p56, %p57
      %p59 = scmp.ne.s32.totalorder %s51, %s54
      %p60 = scmp.eq.s32.totalorder %s27, 0
      %p61 = por %p59, %p60
      %p62 = scmp.ne.s32.totalorder %s51, %s54
      %p63 = scmp.eq.s32.totalorder %s32, 1
      %p64 = por %p62, %p63
      %p65 = scmp.ne.s32.totalorder %s54, %s55
      %p66 = scmp.eq.s32.totalorder %s32, 0
      %p67 = por %p65, %p66
      %p68 = scmp.ne.s32.totalorder %s54, %s55
      %p69 = scmp.eq.s32.totalorder %s33, 1
      %p70 = por %p68, %p69
      %p72 = scmp.ne.s32.totalorder %s55, %s71
      %p73 = scmp.eq.s32.totalorder %s33, 0
      %p74 = por %p72, %p73
      %s75 = sadd.s32 %s34, %s35
      %s76 = sadd.s32 %s46, %s42
      %s77 = ssub.s32 %s75, %s76
      %p78 = scmp.eq.s32.totalorder %s77, 0
      %s80 = sadd.s32 %s79, 1
      %s81 = scalar_select %p78, %s79, %s80
      %p84 = pneg %p78
      %p85 = scmp.eq.s32.totalorder %s27, 1
      %p86 = por %p84, %p85
      %p87 = scmp.ne.s32.totalorder %s79, %s82
      %p88 = scmp.eq.s32.totalorder %s27, 0
      %p89 = por %p87, %p88
      %p90 = scmp.ne.s32.totalorder %s79, %s82
      %p91 = scmp.eq.s32.totalorder %s32, 1
      %p92 = por %p90, %p91
      %p93 = scmp.ne.s32.totalorder %s82, %s83
      %p94 = scmp.eq.s32.totalorder %s32, 0
      %p95 = por %p93, %p94
      %p96 = scmp.ne.s32.totalorder %s82, %s83
      %p97 = scmp.eq.s32.totalorder %s33, 1
      %p98 = por %p96, %p97
      %p100 = scmp.ne.s32.totalorder %s83, %s99
      %p101 = scmp.eq.s32.totalorder %s33, 0
      %p102 = por %p100, %p101
      %s104 = sadd.s32 %s103, 1
      %p107 = scmp.eq.s32.totalorder %s27, 1
      %p108 = scmp.ne.s32.totalorder %s103, %s105
      %p109 = scmp.eq.s32.totalorder %s27, 0
      %p110 = por %p108, %p109
      %p111 = scmp.ne.s32.totalorder %s103, %s105
      %p112 = scmp.eq.s32.totalorder %s32, 1
      %p113 = por %p111, %p112
      %p114 = scmp.ne.s32.totalorder %s105, %s106
      %p115 = scmp.eq.s32.totalorder %s32, 0
      %p116 = por %p114, %p115
      %p117 = scmp.ne.s32.totalorder %s105, %s106
      %p118 = scmp.eq.s32.totalorder %s33, 1
      %p119 = por %p117, %p118
      %p121 = scmp.ne.s32.totalorder %s106, %s120
      %p122 = scmp.eq.s32.totalorder %s33, 0
      %p123 = por %p121, %p122
      %s125 = sadd.s32 %s124, 1
      %p128 = scmp.eq.s32.totalorder %s27, 1
      %p129 = scmp.ne.s32.totalorder %s124, %s126
      %p130 = scmp.eq.s32.totalorder %s27, 0
      %p131 = por %p129, %p130
      %p132 = scmp.ne.s32.totalorder %s124, %s126
      %p133 = scmp.eq.s32.totalorder %s32, 1
      %p134 = por %p132, %p133
      %p135 = scmp.ne.s32.totalorder %s126, %s127
      %p136 = scmp.eq.s32.totalorder %s32, 0
      %p137 = por %p135, %p136
      %p138 = scmp.ne.s32.totalorder %s126, %s127
      %p139 = scmp.eq.s32.totalorder %s33, 1
      %p140 = por %p138, %p139
      %p142 = scmp.ne.s32.totalorder %s127, %s141
      %p143 = scmp.eq.s32.totalorder %s33, 0
      %p144 = por %p142, %p143
      %s145 = ssub.s32 %s34, %s46
      %p146 = scmp.eq.s32.totalorder %s145, 0
      %s148 = sadd.s32 %s147, 1
      %s149 = scalar_select %p146, %s147, %s148
      %p152 = pneg %p146
      %p153 = scmp.eq.s32.totalorder %s27, 1
      %p154 = por %p152, %p153
      %p155 = scmp.ne.s32.totalorder %s147, %s150
      %p156 = scmp.eq.s32.totalorder %s27, 0
      %p157 = por %p155, %p156
      %p158 = scmp.ne.s32.totalorder %s147, %s150
      %p159 = scmp.eq.s32.totalorder %s32, 1
      %p160 = por %p158, %p159
      %p161 = scmp.ne.s32.totalorder %s150, %s151
      %p162 = scmp.eq.s32.totalorder %s32, 0
      %p163 = por %p161, %p162
      %p164 = scmp.ne.s32.totalorder %s150, %s151
      %p165 = scmp.eq.s32.totalorder %s33, 1
      %p166 = por %p164, %p165
      %p168 = scmp.ne.s32.totalorder %s151, %s167
      %p169 = scmp.eq.s32.totalorder %s33, 0
      %p170 = por %p168, %p169
      %s171 = ssub.s32 %s34, %s46
      %p172 = scmp.eq.s32.totalorder %s171, 0
      %s174 = sadd.s32 %s173, 1
      %s175 = scalar_select %p172, %s173, %s174
      %p178 = pneg %p172
      %p179 = scmp.eq.s32.totalorder %s27, 1
      %p180 = por %p178, %p179
      %p181 = scmp.ne.s32.totalorder %s173, %s176
      %p182 = scmp.eq.s32.totalorder %s27, 0
      %p183 = por %p181, %p182
      %p184 = scmp.ne.s32.totalorder %s173, %s176
      %p185 = scmp.eq.s32.totalorder %s32, 1
      %p186 = por %p184, %p185
      %p187 = scmp.ne.s32.totalorder %s176, %s177
      %p188 = scmp.eq.s32.totalorder %s32, 0
      %p189 = por %p187, %p188
      %p190 = scmp.ne.s32.totalorder %s176, %s177
      %p191 = scmp.eq.s32.totalorder %s33, 1
      %p192 = por %p190, %p191
      %p194 = scmp.ne.s32.totalorder %s177, %s193
      %p195 = scmp.eq.s32.totalorder %s33, 0
      %p196 = por %p194, %p195
      %s197 = ssub.s32 %s34, %s46
      %p198 = scmp.eq.s32.totalorder %s197, 0
      %s200 = sadd.s32 %s199, 1
      %s201 = scalar_select %p198, %s199, %s200
      %p204 = pneg %p198
      %p205 = scmp.eq.s32.totalorder %s27, 1
      %p206 = por %p204, %p205
      %p207 = scmp.ne.s32.totalorder %s199, %s202
      %p208 = scmp.eq.s32.totalorder %s27, 0
      %p209 = por %p207, %p208
      %p210 = scmp.ne.s32.totalorder %s199, %s202
      %p211 = scmp.eq.s32.totalorder %s32, 1
      %p212 = por %p210, %p211
      %p213 = scmp.ne.s32.totalorder %s202, %s203
      %p214 = scmp.eq.s32.totalorder %s32, 0
      %p215 = por %p213, %p214
      %p216 = scmp.ne.s32.totalorder %s202, %s203
      %p217 = scmp.eq.s32.totalorder %s33, 1
      %p218 = por %p216, %p217
      %p220 = scmp.ne.s32.totalorder %s203, %s219
      %p221 = scmp.eq.s32.totalorder %s33, 0
      %p222 = por %p220, %p221
      %s223 = ssub.s32 %s34, %s46
      %p224 = scmp.eq.s32.totalorder %s223, 0
      %s226 = sadd.s32 %s225, 1
      %s227 = scalar_select %p224, %s225, %s226
      %p230 = pneg %p224
      %p231 = scmp.eq.s32.totalorder %s27, 1
      %p232 = por %p230, %p231
      %p233 = scmp.ne.s32.totalorder %s225, %s228
      %p234 = scmp.eq.s32.totalorder %s27, 0
      %p235 = por %p233, %p234
      %p236 = scmp.ne.s32.totalorder %s225, %s228
      %p237 = scmp.eq.s32.totalorder %s32, 1
      %p238 = por %p236, %p237
      %p239 = scmp.ne.s32.totalorder %s228, %s229
      %p240 = scmp.eq.s32.totalorder %s32, 0
      %p241 = por %p239, %p240
      %p242 = scmp.ne.s32.totalorder %s228, %s229
      %p243 = scmp.eq.s32.totalorder %s33, 1
      %p244 = por %p242, %p243
      %p246 = scmp.ne.s32.totalorder %s229, %s245
      %p247 = scmp.eq.s32.totalorder %s33, 0
      %p248 = por %p246, %p247
      %s249 = ssub.s32 %s34, %s46
      %p250 = scmp.eq.s32.totalorder %s249, 0
      %s252 = sadd.s32 %s251, 1
      %s253 = scalar_select %p250, %s251, %s252
      %p256 = pneg %p250
      %p257 = scmp.eq.s32.totalorder %s27, 1
      %p258 = por %p256, %p257
      %p259 = scmp.ne.s32.totalorder %s251, %s254
      %p260 = scmp.eq.s32.totalorder %s27, 0
      %p261 = por %p259, %p260
      %p262 = scmp.ne.s32.totalorder %s251, %s254
      %p263 = scmp.eq.s32.totalorder %s32, 1
      %p264 = por %p262, %p263
      %p265 = scmp.ne.s32.totalorder %s254, %s255
      %p266 = scmp.eq.s32.totalorder %s32, 0
      %p267 = por %p265, %p266
      %p268 = scmp.ne.s32.totalorder %s254, %s255
      %p269 = scmp.eq.s32.totalorder %s33, 1
      %p270 = por %p268, %p269
      %p272 = scmp.ne.s32.totalorder %s255, %s271
      %p273 = scmp.eq.s32.totalorder %s33, 0
      %p274 = por %p272, %p273
      %p275 = scmp.le.s32.totalorder 1, %s27
      %p276 = scmp.lt.s32.totalorder %s27, 3
      %p277 = pnand %p275, %p276
      %p278 = pneg %p277
      // Predicated region
      $region9: #{tpu_custom_call.1} parent=5 // pred_check
        _
      $region10: #{tpu_custom_call.1} parent=5 // pred_check_branch
        %280 = sbr.rel (%p277) target = $region12
      $region11: #{tpu_custom_call.1} parent=5 // pred_region
        %s281 = ssub.s32 %s27, 1
        // Predicated region
        $region13: #{tpu_custom_call.1} parent=11 // pred_check
          %p282 = pneg %p116
        $region14: #{tpu_custom_call.1} parent=11 // pred_check_branch
          %284 = sbr.rel (%p282) target = $region16
        $region15: #{tpu_custom_call.1} parent=11 // pred_region
          _
        $region16: #{tpu_custom_call.1} parent=11 // pred_fallthru
          _
        // Predicated region
        $region17: #{tpu_custom_call.1} parent=11 // pred_check
          %p285 = pneg %p137
        $region18: #{tpu_custom_call.1} parent=11 // pred_check_branch
          %287 = sbr.rel (%p285) target = $region20
        $region19: #{tpu_custom_call.1} parent=11 // pred_region
          _
        $region20: #{tpu_custom_call.1} parent=11 // pred_fallthru
          _
      $region12: #{tpu_custom_call.1} parent=5 // pred_fallthru
        _
      %p288 = scmp.lt.s32.totalorder %s27, 2
      // Predicated region
      $region21: #{tpu_custom_call.1} parent=5 // pred_check
        %p289 = pneg %p288
      $region22: #{tpu_custom_call.1} parent=5 // pred_check_branch
        %291 = sbr.rel (%p289) target = $region24
      $region23: #{tpu_custom_call.1} parent=5 // pred_region
        // Predicated region
        $region25: #{tpu_custom_call.1} parent=23 // pred_check
          %p292 = pneg %p61
        $region26: #{tpu_custom_call.1} parent=23 // pred_check_branch
          %294 = sbr.rel (%p292) target = $region28
        $region27: #{tpu_custom_call.1} parent=23 // pred_region
          %s295 = sand.u32 %s51, 1
          %s296 = scalar_lea.sflag [#allocation3], %s295
          %s297 = sand.u32 %s51, 1
          %s298 = smul.addr %s297, 16
          %s299 = scalar_lea.vmem [#allocation2], %s298
          %s300 = sadd.s32 %s34, %s35
          %302 = vsyncadd %s296, 0
          %s303 = smul.addr %s300, 2
          %s304 = smul.addr %s303, 8
          %s305 = scalar_lea.hbm %s0, %s304
          %s306 = sshll.u32 %s305, 4
          %s307 = int_to_ptr.hbm [resolvable:$true] %s306
          %s308 = sshll.u32 %s299, 4
          %s309 = int_to_ptr.vmem [resolvable:$true] %s308
          %314 = dma.hbm_to_vmem [thread:$0]  %s307, 256, %s309, %s296, 128, 128, 8
        $region28: #{tpu_custom_call.1} parent=23 // pred_fallthru
          _
        // Predicated region
        $region29: #{tpu_custom_call.1} parent=23 // pred_check
          %p315 = pneg %p89
        $region30: #{tpu_custom_call.1} parent=23 // pred_check_branch
          %317 = sbr.rel (%p315) target = $region32
        $region31: #{tpu_custom_call.1} parent=23 // pred_region
          %s318 = sadd.s32 %s34, %s35
          %p319 = scmp.lt.s32.totalorder %s318, 1
          %s320 = scalar_select %p319, %s318, 1
          %s321 = smul.addr %s320, 4
          %s322 = scalar_lea.vmem %s1, %s321
          %s323 = sadd.s32 %s34, %s35
        $region32: #{tpu_custom_call.1} parent=23 // pred_fallthru
          _
      $region24: #{tpu_custom_call.1} parent=5 // pred_fallthru
        _
      %p324 = scmp.le.s32.totalorder 1, %s27
      %p325 = scmp.lt.s32.totalorder %s27, 3
      %p326 = pnand %p324, %p325
      %p327 = pneg %p326
      // Predicated region
      $region33: #{tpu_custom_call.1} parent=5 // pred_check
        _
      $region34: #{tpu_custom_call.1} parent=5 // pred_check_branch
        %329 = sbr.rel (%p326) target = $region36
      $region35: #{tpu_custom_call.1} parent=5 // pred_region
        %s330 = ssub.s32 %s27, 1
        %s331 = sand.u32 %s54, 1
        %s332 = scalar_lea.sflag [#allocation3], %s331
        %s333 = sand.u32 %s54, 1
        %s334 = smul.addr %s333, 16
        %s335 = scalar_lea.vmem [#allocation2], %s334
        // Predicated region
        $region37: #{tpu_custom_call.1} parent=35 // pred_check
          %p336 = pneg %p67
        $region38: #{tpu_custom_call.1} parent=35 // pred_check_branch
          %338 = sbr.rel (%p336) target = $region40
        $region39: #{tpu_custom_call.1} parent=35 // pred_region
          %340 = dma.done %s332, 256
        $region40: #{tpu_custom_call.1} parent=35 // pred_fallthru
          _
        %s341 = sand.u32 %s54, 1
        %s342 = scalar_lea.sflag [#allocation3], %s341
        %s343 = sand.u32 %s54, 1
        %s344 = smul.addr %s343, 16
        %s345 = scalar_lea.vmem [#allocation2], %s344
        %p346 = pneg %p67
        %p347 = pneg %p64
        %s348 = sadd.s32 %s36, %s37
        %p349 = scmp.lt.s32.totalorder %s348, 1
        %s350 = scalar_select %p349, %s348, 1
        %s351 = smul.addr %s350, 4
        %s352 = scalar_lea.vmem %s1, %s351
        %p353 = pneg %p95
        %p354 = pneg %p92
        %p355 = pneg %p116
        %p356 = pneg %p113
        %p357 = pneg %p137
        %p358 = pneg %p134
        %p359 = pneg %p163
        %p360 = pneg %p160
        %s361 = sand.u32 %s150, 1
        %s362 = scalar_lea.sflag [#allocation4], %s361
        %s363 = sand.u32 %s150, 1
        %s364 = smul.addr %s363, 8
        %s365 = scalar_lea.vmem [#allocation5], %s364
        %p366 = pneg %p189
        %p367 = pneg %p186
        %s368 = sand.u32 %s32, 1
        %s369 = scalar_lea.sflag [#allocation7], %s368
        %s370 = sand.u32 %s176, 1
        %s371 = smul.addr %s370, 8
        %s372 = scalar_lea.vmem [#allocation6], %s371
        %p373 = pneg %p215
        %p374 = pneg %p212
        %s375 = sand.u32 %s32, 1
        %s376 = scalar_lea.sflag [#allocation7], %s375
        %s377 = sand.u32 %s202, 1
        %s378 = smul.addr %s377, 8
        %s379 = scalar_lea.vmem [#allocation8], %s378
        %p380 = pneg %p241
        %p381 = pneg %p238
        %s382 = sand.u32 %s32, 1
        %s383 = scalar_lea.sflag [#allocation10], %s382
        %s384 = sand.u32 %s228, 1
        %s385 = smul.addr %s384, 8
        %s386 = scalar_lea.vmem [#allocation9], %s385
        %p387 = pneg %p267
        %p388 = pneg %p264
        %s389 = sand.u32 %s32, 1
        %s390 = scalar_lea.sflag [#allocation10], %s389
        %s391 = sand.u32 %s254, 1
        %s392 = smul.addr %s391, 8
        %s393 = scalar_lea.vmem [#allocation11], %s392
        %s394 = sadd.s32 %s36, %s37
        %s395 = sadd.s32 %s36, %s37
        %p396 = scmp.lt.s32.totalorder %s395, 1
        %s397 = scalar_select %p396, %s395, 1
        %s398 = smul.addr %s397, 4
        %s399 = scalar_lea.vmem %s1, %s398
        %s400 = sadd.s32 %s36, %s37
        %p401 = scmp.eq.s32.totalorder %s37, 0
        // Predicated region
        $region41: #{tpu_custom_call.1} parent=35 // pred_check
          %p402 = pneg %p401
        $region42: #{tpu_custom_call.1} parent=35 // pred_check_branch
          %404 = sbr.rel (%p402) target = $region44
        $region43: #{tpu_custom_call.1} parent=35 // pred_region
          %405 = vst [vmem:[%s365] sm:$0xff] 0.0
          %406 = vst [vmem:[%s372] sm:$0xff] 0.0
          %407 = vst [vmem:[%s379] sm:$0xff] 0.0
          %408 = vst [vmem:[%s386] sm:$0xff] 0.0
          %409 = vst [vmem:[%s393] sm:$0xff] 0.0
        $region44: #{tpu_custom_call.1} parent=35 // pred_fallthru
          _
        %v410 = vld [vmem:[%s2] sm:$0xf]
        %v411 = vld [vmem:[%s3] sm:$0xff]
        %v412 = vld [vmem:[%s3 + $0x8] sm:$0xff]
        %v413 = vld [vmem:[%s335] sm:$0xff]
        %v414 = vld [vmem:[%s335 + $0x8] sm:$0xff]
        %v415 = vld [vmem:[%s399] sm:$0xf]
        %vm416 = vcmask 130048
        %v418 = vsel %vm416, %v410, 0
        %420 = vmatpush.msra.mxu0 0.0
        %421 = vmatpush.msra.mxu0 0.0
        %422 = vmatpush.msra.mxu0 0.0
        %423 = vmatpush.msra.mxu0 0.0
        %424 = vmatpush.msra.mxu0 0.0
        %425 = vmatpush.msra.mxu0 0.0
        %426 = vmatpush.msra.mxu0 0.0
        %427 = vmatpush.msra.mxu0 0.0
        %428 = vmatpush.msra.mxu0 0.0
        %429 = vmatpush.msra.mxu0 0.0
        %430 = vmatpush.msra.mxu0 0.0
        %431 = vmatpush.msra.mxu0 0.0
        %432 = vmatpush.msra.mxu0 0.0
        %433 = vmatpush.msra.mxu0 0.0
        %434 = vmatpush.msra.mxu0 %v414
        %435 = vmatpush.msra.mxu0 %v413
        %436 = vmatmul.f32.gmra.mxu0 %v418
        %v437 = vpop.f32.mrf.mxu0
        %v438 = vadd.f32 0.0, %v437
        %439 = vdwg.mxu0
        %v441 = vsel %vm416, %v438, 0
        %443 = vmatpush.msra.mxu0 0.0
        %444 = vmatpush.msra.mxu0 0.0
        %445 = vmatpush.msra.mxu0 0.0
        %446 = vmatpush.msra.mxu0 0.0
        %447 = vmatpush.msra.mxu0 0.0
        %448 = vmatpush.msra.mxu0 0.0
        %449 = vmatpush.msra.mxu0 0.0
        %450 = vmatpush.msra.mxu0 0.0
        %451 = vmatpush.msra.mxu0 0.0
        %452 = vmatpush.msra.mxu0 0.0
        %453 = vmatpush.msra.mxu0 0.0
        %454 = vmatpush.msra.mxu0 0.0
        %455 = vmatpush.msra.mxu0 0.0
        %456 = vmatpush.msra.mxu0 0.0
        %457 = vmatpush.msra.mxu0 %v412
        %458 = vmatpush.msra.mxu0 %v411
        %459 = vmatmul.f32.gmra.mxu0 %v441
        %v460 = vpop.f32.mrf.mxu0
        %v461 = vadd.f32 0.0, %v460
        %462 = vdwg.mxu0
        %v463 = vsel %vm416, %v413, 0.0
        %v464 = vsel %vm416, %v414, 0.0
        %v465 = vadd.f32 %v463, %v464
        %466 = vadd.xlane.f32.xlu0 %v465
        %v467 = vpop.xlane.xlu0 %466
        %v468 = vrot.slane %v467, 4
        %v469 = vadd.f32 %v467, %v468
        %v470 = vrot.slane %v469, 2
        %v471 = vadd.f32 %v469, %v470
        %v472 = vrot.slane %v471, 1
        %v473 = vadd.f32 %v471, %v472
        %s474 = vtos %v473
        %s475 = sadd.f32 %s474, 0.0
        %vm476 = vcmask 27648
        %v477 = vsel %vm476, %v461, 0.0
        %478 = vadd.xlane.f32.xlu0 %v477
        %v479 = vpop.xlane.xlu0 %478
        %v480 = vrot.slane %v479, 4
        %v481 = vadd.f32 %v479, %v480
        %v482 = vrot.slane %v481, 2
        %v483 = vadd.f32 %v481, %v482
        %v484 = vrot.slane %v483, 1
        %v485 = vadd.f32 %v483, %v484
        %s486 = vtos %v485
        %s487 = sadd.f32 %s486, 0.0
        %v488 = vmul.f32 %v415, %v415
        %v489 = vsel %vm476, %v488, 0.0
        %490 = vadd.xlane.f32.xlu0 %v489
        %v491 = vpop.xlane.xlu0 %490
        %v492 = vrot.slane %v491, 4
        %v493 = vadd.f32 %v491, %v492
        %v494 = vrot.slane %v493, 2
        %v495 = vadd.f32 %v493, %v494
        %v496 = vrot.slane %v495, 1
        %v497 = vadd.f32 %v495, %v496
        %s498 = vtos %v497
        %s499 = sadd.f32 %s498, 0.0
        %v500 = vmul.f32 %v415, %v461
        %v501 = vsel %vm476, %v500, 0.0
        %502 = vadd.xlane.f32.xlu0 %v501
        %v503 = vpop.xlane.xlu0 %502
        %v504 = vrot.slane %v503, 4
        %v505 = vadd.f32 %v503, %v504
        %v506 = vrot.slane %v505, 2
        %v507 = vadd.f32 %v505, %v506
        %v508 = vrot.slane %v507, 1
        %v509 = vadd.f32 %v507, %v508
        %s510 = vtos %v509
        %s511 = sadd.f32 %s510, 0.0
        %v512 = vmul.f32 %v461, %v461
        %v513 = vsel %vm476, %v512, 0.0
        %514 = vadd.xlane.f32.xlu0 %v513
        %v515 = vpop.xlane.xlu0 %514
        %v516 = vrot.slane %v515, 4
        %v517 = vadd.f32 %v515, %v516
        %v518 = vrot.slane %v517, 2
        %v519 = vadd.f32 %v517, %v518
        %v520 = vrot.slane %v519, 1
        %v521 = vadd.f32 %v519, %v520
        %s522 = vtos %v521
        %s523 = sadd.f32 %s522, 0.0
        %v524 = vld [vmem:[%s365] sm:$0xff]
        %v525 = vstv %s475
        %v526 = vadd.f32 %v524, %v525
        %527 = vst [vmem:[%s365] sm:$0xff] %v526
        %v528 = vld [vmem:[%s372] sm:$0xff]
        %v529 = vstv %s487
        %v530 = vadd.f32 %v528, %v529
        %531 = vst [vmem:[%s372] sm:$0xff] %v530
        %v532 = vld [vmem:[%s379] sm:$0xff]
        %v533 = vstv %s499
        %v534 = vadd.f32 %v532, %v533
        %535 = vst [vmem:[%s379] sm:$0xff] %v534
        %v536 = vld [vmem:[%s386] sm:$0xff]
        %v537 = vstv %s511
        %v538 = vadd.f32 %v536, %v537
        %539 = vst [vmem:[%s386] sm:$0xff] %v538
        %v540 = vld [vmem:[%s393] sm:$0xff]
        %v541 = vstv %s523
        %v542 = vadd.f32 %v540, %v541
        %543 = vst [vmem:[%s393] sm:$0xff] %v542
        %s544 = sand.u32 %s150, 1
        %s545 = scalar_lea.sflag [#allocation4], %s544
        %s546 = sand.u32 %s150, 1
        %s547 = smul.addr %s546, 8
        %s548 = scalar_lea.vmem [#allocation5], %s547
        %s549 = sand.u32 %s32, 1
        %s550 = scalar_lea.sflag [#allocation7], %s549
        %s551 = sand.u32 %s176, 1
        %s552 = smul.addr %s551, 8
        %s553 = scalar_lea.vmem [#allocation6], %s552
        %s554 = sand.u32 %s32, 1
        %s555 = scalar_lea.sflag [#allocation7], %s554
        %s556 = sand.u32 %s202, 1
        %s557 = smul.addr %s556, 8
        %s558 = scalar_lea.vmem [#allocation8], %s557
        %s559 = sand.u32 %s32, 1
        %s560 = scalar_lea.sflag [#allocation10], %s559
        %s561 = sand.u32 %s228, 1
        %s562 = smul.addr %s561, 8
        %s563 = scalar_lea.vmem [#allocation9], %s562
        %s564 = sand.u32 %s32, 1
        %s565 = scalar_lea.sflag [#allocation10], %s564
        %s566 = sand.u32 %s254, 1
        %s567 = smul.addr %s566, 8
        %s568 = scalar_lea.vmem [#allocation11], %s567
        // Predicated region
        $region45: #{tpu_custom_call.1} parent=35 // pred_check
          %p569 = pneg %p160
        $region46: #{tpu_custom_call.1} parent=35 // pred_check_branch
          %571 = sbr.rel (%p569) target = $region48
        $region47: #{tpu_custom_call.1} parent=35 // pred_region
          %573 = vsyncadd %s545, 0
          %s574 = smul.addr %s36, 8
          %s575 = scalar_lea.hbm %s4, %s574
          %s577 = sshll.u32 %s548, 4
          %s578 = int_to_ptr.vmem [resolvable:$true] %s577
          %s579 = sshll.u32 %s575, 4
          %s580 = int_to_ptr.hbm [resolvable:$true] %s579
          %582 = dma.vmem_to_hbm [thread:$0]  %s578, 128, %s580, %s545
        $region48: #{tpu_custom_call.1} parent=35 // pred_fallthru
          _
        // Predicated region
        $region49: #{tpu_custom_call.1} parent=35 // pred_check
          %p583 = pneg %p186
        $region50: #{tpu_custom_call.1} parent=35 // pred_check_branch
          %585 = sbr.rel (%p583) target = $region52
        $region51: #{tpu_custom_call.1} parent=35 // pred_region
          %587 = vsyncadd %s550, 0
          %s588 = smul.addr %s36, 8
          %s589 = scalar_lea.hbm %s5, %s588
          %s591 = sshll.u32 %s553, 4
          %s592 = int_to_ptr.vmem [resolvable:$true] %s591
          %s593 = sshll.u32 %s589, 4
          %s594 = int_to_ptr.hbm [resolvable:$true] %s593
          %596 = dma.vmem_to_hbm [thread:$0]  %s592, 128, %s594, %s550
        $region52: #{tpu_custom_call.1} parent=35 // pred_fallthru
          _
        // Predicated region
        $region53: #{tpu_custom_call.1} parent=35 // pred_check
          %p597 = pneg %p212
        $region54: #{tpu_custom_call.1} parent=35 // pred_check_branch
          %599 = sbr.rel (%p597) target = $region56
        $region55: #{tpu_custom_call.1} parent=35 // pred_region
          %601 = vsyncadd %s555, 0
          %s602 = smul.addr %s36, 8
          %s603 = scalar_lea.hbm %s6, %s602
          %s605 = sshll.u32 %s558, 4
          %s606 = int_to_ptr.vmem [resolvable:$true] %s605
          %s607 = sshll.u32 %s603, 4
          %s608 = int_to_ptr.hbm [resolvable:$true] %s607
          %610 = dma.vmem_to_hbm [thread:$0]  %s606, 128, %s608, %s555
        $region56: #{tpu_custom_call.1} parent=35 // pred_fallthru
          _
        // Predicated region
        $region57: #{tpu_custom_call.1} parent=35 // pred_check
          %p611 = pneg %p238
        $region58: #{tpu_custom_call.1} parent=35 // pred_check_branch
          %613 = sbr.rel (%p611) target = $region60
        $region59: #{tpu_custom_call.1} parent=35 // pred_region
          %615 = vsyncadd %s560, 0
          %s616 = smul.addr %s36, 8
          %s617 = scalar_lea.hbm %s7, %s616
          %s619 = sshll.u32 %s563, 4
          %s620 = int_to_ptr.vmem [resolvable:$true] %s619
          %s621 = sshll.u32 %s617, 4
          %s622 = int_to_ptr.hbm [resolvable:$true] %s621
          %624 = dma.vmem_to_hbm [thread:$0]  %s620, 128, %s622, %s560
        $region60: #{tpu_custom_call.1} parent=35 // pred_fallthru
          _
        // Predicated region
        $region61: #{tpu_custom_call.1} parent=35 // pred_check
          %p625 = pneg %p264
        $region62: #{tpu_custom_call.1} parent=35 // pred_check_branch
          %627 = sbr.rel (%p625) target = $region64
        $region63: #{tpu_custom_call.1} parent=35 // pred_region
          %629 = vsyncadd %s565, 0
          %s630 = smul.addr %s36, 8
          %s631 = scalar_lea.hbm %s8, %s630
          %s633 = sshll.u32 %s568, 4
          %s634 = int_to_ptr.vmem [resolvable:$true] %s633
          %s635 = sshll.u32 %s631, 4
          %s636 = int_to_ptr.hbm [resolvable:$true] %s635
          %638 = dma.vmem_to_hbm [thread:$0]  %s634, 128, %s636, %s565
        $region64: #{tpu_custom_call.1} parent=35 // pred_fallthru
          _
      $region36: #{tpu_custom_call.1} parent=5 // pred_fallthru
        _
      %p639 = scmp.le.s32.totalorder 2, %s27
      // Predicated region
      $region65: #{tpu_custom_call.1} parent=5 // pred_check
        %p640 = pneg %p639
      $region66: #{tpu_custom_call.1} parent=5 // pred_check_branch
        %642 = sbr.rel (%p640) target = $region68
      $region67: #{tpu_custom_call.1} parent=5 // pred_region
        %s643 = ssub.s32 %s27, 2
        // Predicated region
        $region69: #{tpu_custom_call.1} parent=67 // pred_check
          %p644 = pneg %p166
        $region70: #{tpu_custom_call.1} parent=67 // pred_check_branch
          %646 = sbr.rel (%p644) target = $region72
        $region71: #{tpu_custom_call.1} parent=67 // pred_region
          %s647 = sand.u32 %s151, 1
          %s648 = scalar_lea.sflag [#allocation4], %s647
          %s649 = sand.u32 %s151, 1
          %s650 = smul.addr %s649, 8
          %s651 = scalar_lea.vmem [#allocation5], %s650
          %653 = dma.done %s648, 128
        $region72: #{tpu_custom_call.1} parent=67 // pred_fallthru
          _
        // Predicated region
        $region73: #{tpu_custom_call.1} parent=67 // pred_check
          %p654 = pneg %p192
        $region74: #{tpu_custom_call.1} parent=67 // pred_check_branch
          %656 = sbr.rel (%p654) target = $region76
        $region75: #{tpu_custom_call.1} parent=67 // pred_region
          %s657 = sand.u32 %s33, 1
          %s658 = scalar_lea.sflag [#allocation7], %s657
          %s659 = sand.u32 %s177, 1
          %s660 = smul.addr %s659, 8
          %s661 = scalar_lea.vmem [#allocation6], %s660
          %663 = dma.done %s658, 128
        $region76: #{tpu_custom_call.1} parent=67 // pred_fallthru
          _
        // Predicated region
        $region77: #{tpu_custom_call.1} parent=67 // pred_check
          %p664 = pneg %p218
        $region78: #{tpu_custom_call.1} parent=67 // pred_check_branch
          %666 = sbr.rel (%p664) target = $region80
        $region79: #{tpu_custom_call.1} parent=67 // pred_region
          %s667 = sand.u32 %s33, 1
          %s668 = scalar_lea.sflag [#allocation7], %s667
          %s669 = sand.u32 %s203, 1
          %s670 = smul.addr %s669, 8
          %s671 = scalar_lea.vmem [#allocation8], %s670
          %673 = dma.done %s668, 128
        $region80: #{tpu_custom_call.1} parent=67 // pred_fallthru
          _
        // Predicated region
        $region81: #{tpu_custom_call.1} parent=67 // pred_check
          %p674 = pneg %p244
        $region82: #{tpu_custom_call.1} parent=67 // pred_check_branch
          %676 = sbr.rel (%p674) target = $region84
        $region83: #{tpu_custom_call.1} parent=67 // pred_region
          %s677 = sand.u32 %s33, 1
          %s678 = scalar_lea.sflag [#allocation10], %s677
          %s679 = sand.u32 %s229, 1
          %s680 = smul.addr %s679, 8
          %s681 = scalar_lea.vmem [#allocation9], %s680
          %683 = dma.done %s678, 128
        $region84: #{tpu_custom_call.1} parent=67 // pred_fallthru
          _
        // Predicated region
        $region85: #{tpu_custom_call.1} parent=67 // pred_check
          %p684 = pneg %p270
        $region86: #{tpu_custom_call.1} parent=67 // pred_check_branch
          %686 = sbr.rel (%p684) target = $region88
        $region87: #{tpu_custom_call.1} parent=67 // pred_region
          %s687 = sand.u32 %s33, 1
          %s688 = scalar_lea.sflag [#allocation10], %s687
          %s689 = sand.u32 %s255, 1
          %s690 = smul.addr %s689, 8
          %s691 = scalar_lea.vmem [#allocation11], %s690
          %693 = dma.done %s688, 128
        $region88: #{tpu_custom_call.1} parent=67 // pred_fallthru
          _
      $region68: #{tpu_custom_call.1} parent=5 // pred_fallthru
        _
    $region6: #{tpu_custom_call.1} parent=1 // loop_footer
      %s31 = sadd.s32 1, %s27
    $region7: #{tpu_custom_call.1} parent=1 // loop_footer_branch
      %26 = sbr.rel target = $region3
    $region8: #{tpu_custom_call.1} parent=1 // loop_exit
      _
    %694 = vsyncpa [#allocation3], 1
    %s695 = scalar_lea.sflag [#allocation3], 1
    %696 = vsyncpa %s695, 1
    %697 = vsyncpa [#allocation4], 1
    %s698 = scalar_lea.sflag [#allocation4], 1
    %699 = vsyncpa %s698, 1
    %700 = vsyncpa [#allocation7], 1
    %s701 = scalar_lea.sflag [#allocation7], 1
    %702 = vsyncpa %s701, 1
    %703 = vsyncpa [#allocation10], 1
    %s704 = scalar_lea.sflag [#allocation10], 1
    %705 = vsyncpa %s704, 1

</llo_original>
